<compile_context>
chip_gen: v7x
topology: tpu7x:2x2x1
jax: 0.10.0
libtpu: 0.0.40
codegen_flags: <defaults>
</compile_context>

<pallas_src>
import math

import jax
import jax.numpy as jnp
from jax import lax
from jax.experimental import pallas as pl
from jax.experimental.pallas import tpu as pltpu


def _round_up(x, m):
    return ((x + m - 1) // m) * m


def _padded_tile_bytes(rows, cols, itemsize):
    # A VMEM block pads its last two dims to (8, 128).
    return _round_up(rows, 8) * _round_up(cols, 128) * itemsize


def _vmem_ceiling_bytes():
    """Per-generation usable VMEM (~48 MiB on v7x, ~96 MiB on v5e/v6e)."""
    try:
        cap = int(pltpu.get_tpu_info().vmem_capacity_bytes)
    except Exception:
        cap = 128 * 1024 * 1024
    return min((cap * 3) // 4, 100 * 1024 * 1024)


def _make_critic_kernel(compute_dtype):
    """3-layer MLP kernel, lane-dense compute (batch on lanes).

    Refs:
      x_ref  : [TB, state_dim]     input tile, exactly as stored in HBM
      w1_ref : [hidden, state_dim] PyTorch [out, in] layout (resident)
      w2_ref : [hidden, hidden]    (resident)
      bw_ref : [hidden, 3]         packed resident f32 tile: b1 | b2 | w3
      b3_ref : [1, 1] (SMEM)       scalar bias
      o_ref  : [1, TB]             lane-dense output tile
    """

    def kernel(x_ref, w1_ref, w2_ref, bw_ref, b3_ref, o_ref):
        x = x_ref[...].astype(compute_dtype)          # [TB, state_dim]
        bw = bw_ref[...]                              # [hidden, 3] f32
        b1 = bw[:, 0:1]
        b2 = bw[:, 1:2]
        w3 = bw[:, 2:3]
        # Layer 1: h1 = relu(W1 @ x^T + b1) -> [hidden, TB].  Contract the lane
        # dim of both operands; the (cheap, XLU-idle) transpose happens inside
        # the kernel instead of as an extra HBM pass in the wrapper.
        h1 = lax.dot_general(w1_ref[...], x, (((1,), (1,)), ((), ())),
                             preferred_element_type=jnp.float32)
        h1 = jnp.maximum(h1 + b1, 0.0)
        # Layer 2: h2 = relu(W2 @ h1 + b2) -> [hidden, TB]
        h2 = jnp.dot(w2_ref[...], h1.astype(compute_dtype),
                     preferred_element_type=jnp.float32)
        h2 = jnp.maximum(h2 + b2, 0.0)
        # Layer 3 (output width 1): VPU broadcast-mul + sublane reduce instead
        # of an N=1 MXU matmul.  Output tile is lane-dense [1, TB].
        o_ref[...] = jnp.sum(h2 * w3, axis=0, keepdims=True) + b3_ref[0, 0]

    return kernel


def critic_forward(state, params, *, block_b=None, use_bf16=False):
    """state: [B, state_dim] float32 -> [B] float32 value estimates."""
    w1, b1, w2, b2, w3, b3 = params
    B, state_dim = state.shape
    hidden = w1.shape[0]
    compute_dtype = jnp.bfloat16 if use_bf16 else jnp.float32
    witem = jnp.dtype(compute_dtype).itemsize

    # Resident operands: weights (optionally bf16, cast once -- tiny & reused by
    # every grid step) and one packed [hidden, 3] f32 tile = b1 | b2 | w3.
    w1c = w1.astype(compute_dtype)
    w2c = w2.astype(compute_dtype)
    bw = jnp.concatenate([b1, b2, w3], axis=1).astype(jnp.float32)   # [hidden, 3]

    ceiling = _vmem_ceiling_bytes()
    # Resident blocks are (8,128)-padded and double-buffered by the pipeline.
    weight_bytes = 2 * (_padded_tile_bytes(hidden, state_dim, witem)
                        + _padded_tile_bytes(hidden, hidden, witem)
                        + _padded_tile_bytes(hidden, 3, 4))

    # ---- batch-tile sizing (by bytes, per-generation VMEM) -----------------
    if B < 128:
        TB = B  # single block == full array, so the (8,128) rule doesn't apply
    else:
        # Bytes per batch lane: double-buffered f32 x tile + double-buffered
        # sublane-padded [1, TB] out tile + f32 h1/h2 (+ temp) intermediates.
        per_lane = 2 * state_dim * 4 + 2 * 8 * 4 + 3 * hidden * 4
        avail = max(ceiling - weight_bytes, per_lane * 128)
        tb_vmem = max(128, (avail // per_lane) // 128 * 128)
        # Target >= ~2 MiB x tile to amortize the ~0.35us per-grid-step overhead.
        tb_target = max(128, ((2 * 1024 * 1024) // (state_dim * 4)) // 128 * 128)
        TB = max(128, min(tb_target, tb_vmem, (B // 128) * 128))
        if block_b is not None:
            TB = max(128, min(TB, (block_b // 128) * 128))
        # Ensure >= 2 grid steps when possible so v7x's two TensorCores both
        # get work (no effect on single-TC v5e/v6e).
        if pl.cdiv(B, TB) < 2 and TB >= 256:
            TB = max(128, (TB // 2) // 128 * 128)

    grid = (pl.cdiv(B, TB),)

    # VMEM budget for this tile choice (with 2x headroom, per-generation cap).
    x_buf = 2 * TB * state_dim * 4
    o_buf = 2 * _padded_tile_bytes(1, TB, 4)
    interm = 3 * hidden * _round_up(TB, 128) * 4
    vmem_limit = int(min(ceiling,
                         max(2 * (x_buf + o_buf + interm + weight_bytes),
                             4 * 1024 * 1024)))

    out = pl.pallas_call(
        _make_critic_kernel(compute_dtype),
        out_shape=jax.ShapeDtypeStruct((1, B), jnp.float32),
        grid=grid,
        in_specs=[
            pl.BlockSpec((TB, state_dim), lambda i: (i, 0)),      # x, streamed as-is
            pl.BlockSpec((hidden, state_dim), lambda i: (0, 0)),  # w1 (resident)
            pl.BlockSpec((hidden, hidden), lambda i: (0, 0)),     # w2 (resident)
            pl.BlockSpec((hidden, 3), lambda i: (0, 0)),          # b1|b2|w3 packed
            pl.BlockSpec((1, 1), lambda i: (0, 0),
                         memory_space=pltpu.MemorySpace.SMEM),    # b3 scalar
        ],
        out_specs=pl.BlockSpec((1, TB), lambda i: (0, i)),        # lane-dense output
        compiler_params=pltpu.CompilerParams(
            dimension_semantics=("parallel",),
            vmem_limit_bytes=vmem_limit,
        ),
    )(state, w1c, w2c, bw, b3)

    # .squeeze(-1) of the PyTorch module (ragged last tile already clipped by
    # the bounded output writeback).
    return out[0]


def kaiming_uniform(key, fan_out, fan_in):
    """PyTorch nn.init.kaiming_uniform_(nonlinearity='relu'); weight [out, in]."""
    bound = math.sqrt(2.0) * math.sqrt(3.0 / fan_in)
    return jax.random.uniform(key, (fan_out, fan_in), dtype=jnp.float32,
                              minval=-bound, maxval=bound)


def init_critic_params(key, state_dim, hidden_dim):
    k1, k2, k3 = jax.random.split(key, 3)
    w1 = kaiming_uniform(k1, hidden_dim, state_dim)     # [hidden, state_dim]
    b1 = jnp.zeros((hidden_dim, 1), jnp.float32)
    w2 = kaiming_uniform(k2, hidden_dim, hidden_dim)    # [hidden, hidden]
    b2 = jnp.zeros((hidden_dim, 1), jnp.float32)
    w3 = kaiming_uniform(k3, 1, hidden_dim).T           # stored as [hidden, 1]
    b3 = jnp.zeros((1, 1), jnp.float32)
    return (w1, b1, w2, b2, w3, b3)


def critic_reference(state, params):
    """Pure-JAX f32 reference for correctness check."""
    w1, b1, w2, b2, w3, b3 = params
    h1 = jnp.maximum(state @ w1.T + b1[:, 0], 0.0)
    h2 = jnp.maximum(h1 @ w2.T + b2[:, 0], 0.0)
    return (h2 @ w3 + b3)[:, 0]


if __name__ == "__main__":
    key = jax.random.PRNGKey(0)
    k_params, k_state, k_big, k_huge, kb1, kb2, kb3 = jax.random.split(key, 7)

    batch, state_dim, hidden_dim = 2, 16, 32

    w1, b1, w2, b2, w3, b3 = init_critic_params(k_params, state_dim, hidden_dim)
    # The module zero-inits biases; use small non-zero biases in the test so the
    # packed-bias and SMEM-scalar paths are actually exercised.
    b1 = 0.1 * jax.random.normal(kb1, b1.shape, jnp.float32)
    b2 = 0.1 * jax.random.normal(kb2, b2.shape, jnp.float32)
    b3 = 0.1 * jax.random.normal(kb3, b3.shape, jnp.float32)
    params = (w1, b1, w2, b2, w3, b3)

    state = jax.random.normal(k_state, (batch, state_dim), dtype=jnp.float32)

    # f32 path, tiny batch (single full-array block).
    value = jax.block_until_ready(critic_forward(state, params))
    ref = critic_reference(state, params)
    assert value.shape == (batch,), value.shape
    assert jnp.allclose(value, ref, atol=1e-4, rtol=1e-4), (value, ref)

    # f32 path, multi-tile grid with a ragged last block (300 rows, TB=128 -> 3 steps).
    big_state = jax.random.normal(k_big, (300, state_dim), dtype=jnp.float32)
    big_value = jax.block_until_ready(critic_forward(big_state, params, block_b=128))
    big_ref = critic_reference(big_state, params)
    assert big_value.shape == (300,), big_value.shape
    assert jnp.allclose(big_value, big_ref, atol=1e-4, rtol=1e-4)

    # f32 path, auto-sized tiles + forced >=2 grid steps (TC-split path).
    huge_state = jax.random.normal(k_huge, (2048, state_dim), dtype=jnp.float32)
    huge_value = jax.block_until_ready(critic_forward(huge_state, params))
    huge_ref = critic_reference(huge_state, params)
    assert huge_value.shape == (2048,), huge_value.shape
    assert jnp.allclose(huge_value, huge_ref, atol=1e-4, rtol=1e-4)

    # bf16 MXU path (x cast in-kernel, f32 accumulation / VPU math).
    value_bf16 = jax.block_until_ready(critic_forward(state, params, use_bf16=True))
    assert value_bf16.shape == (batch,), value_bf16.shape
    assert jnp.allclose(value_bf16, ref, atol=1e-1, rtol=5e-2), (value_bf16, ref)

    print("KERNEL_OK")
</pallas_src>

<mosaic_0001>
module attributes {stable_mosaic.version = 11 : i64} {
  func.func @kernel(%arg0: i32, %arg1: memref<2x16xf32, #tpu.memory_space<vmem>>, %arg2: memref<32x16xf32, #tpu.memory_space<vmem>>, %arg3: memref<32x32xf32, #tpu.memory_space<vmem>>, %arg4: memref<32x3xf32, #tpu.memory_space<vmem>>, %arg5: memref<1x1xf32, #tpu.memory_space<smem>>, %arg6: memref<1x2xf32, #tpu.memory_space<vmem>>) attributes {dimension_semantics = [#tpu.dimension_semantics<parallel>], iteration_bounds = array<i64: 1>, scalar_prefetch = 0 : i64, scratch_operands = 0 : i64, tpu.core_type = #tpu.core_type<tc>, window_params = [{transform_indices = @transform_0, window_bounds = array<i64: 2, 16>}, {pipeline_mode = #tpu.pipeline_mode<synchronous>, transform_indices = @transform_1, window_bounds = array<i64: 32, 16>}, {pipeline_mode = #tpu.pipeline_mode<synchronous>, transform_indices = @transform_2, window_bounds = array<i64: 32, 32>}, {pipeline_mode = #tpu.pipeline_mode<synchronous>, transform_indices = @transform_3, window_bounds = array<i64: 32, 3>}, {transform_indices = @transform_4, window_bounds = array<i64: 1, 1>}, {transform_indices = @transform_5, window_bounds = array<i64: 1, 2>}]} {
    %c0 = arith.constant 0 : index
    %c0_0 = arith.constant 0 : index
    %0 = vector.load %arg1[%c0, %c0_0] : memref<2x16xf32, #tpu.memory_space<vmem>>, vector<2x16xf32>
    %c0_1 = arith.constant 0 : index
    %c0_2 = arith.constant 0 : index
    %1 = vector.load %arg4[%c0_1, %c0_2] : memref<32x3xf32, #tpu.memory_space<vmem>>, vector<32x3xf32>
    %2 = vector.extract_strided_slice %1 {offsets = [0, 0], sizes = [32, 1], strides = [1, 1]} : vector<32x3xf32> to vector<32x1xf32>
    %3 = vector.extract_strided_slice %1 {offsets = [0, 1], sizes = [32, 1], strides = [1, 1]} : vector<32x3xf32> to vector<32x1xf32>
    %4 = vector.extract_strided_slice %1 {offsets = [0, 2], sizes = [32, 1], strides = [1, 1]} : vector<32x3xf32> to vector<32x1xf32>
    %c0_3 = arith.constant 0 : index
    %c0_4 = arith.constant 0 : index
    %5 = vector.load %arg2[%c0_3, %c0_4] : memref<32x16xf32, #tpu.memory_space<vmem>>, vector<32x16xf32>
    %cst = arith.constant dense<0.000000e+00> : vector<32x2xf32>
    %6 = tpu.matmul %5, %0, %cst {dimension_numbers = #tpu.dot_dimension_numbers<[1], [1], [0], [0], [0, 0, 1, 0], [], []>} : vector<32x16xf32>, vector<2x16xf32>, vector<32x2xf32> -> vector<32x2xf32>
    %7 = vector.broadcast %2 : vector<32x1xf32> to vector<32x2xf32>
    %8 = arith.addf %6, %7 : vector<32x2xf32>
    %cst_5 = arith.constant 0.000000e+00 : f32
    %9 = vector.broadcast %cst_5 : f32 to vector<32x2xf32>
    %10 = arith.maximumf %8, %9 : vector<32x2xf32>
    %c0_6 = arith.constant 0 : index
    %c0_7 = arith.constant 0 : index
    %11 = vector.load %arg3[%c0_6, %c0_7] : memref<32x32xf32, #tpu.memory_space<vmem>>, vector<32x32xf32>
    %cst_8 = arith.constant dense<0.000000e+00> : vector<32x2xf32>
    %12 = tpu.matmul %11, %10, %cst_8 {dimension_numbers = #tpu.dot_dimension_numbers<[1], [0], [0], [1], [0, 0, 1, 1], [], []>} : vector<32x32xf32>, vector<32x2xf32>, vector<32x2xf32> -> vector<32x2xf32>
    %13 = vector.broadcast %3 : vector<32x1xf32> to vector<32x2xf32>
    %14 = arith.addf %12, %13 : vector<32x2xf32>
    %cst_9 = arith.constant 0.000000e+00 : f32
    %15 = vector.broadcast %cst_9 : f32 to vector<32x2xf32>
    %16 = arith.maximumf %14, %15 : vector<32x2xf32>
    %17 = vector.broadcast %4 : vector<32x1xf32> to vector<32x2xf32>
    %18 = arith.mulf %16, %17 : vector<32x2xf32>
    %cst_10 = arith.constant dense<0.000000e+00> : vector<2xf32>
    %19 = vector.multi_reduction <add>, %18, %cst_10 [0] : vector<32x2xf32> to vector<2xf32>
    %20 = vector.shape_cast %19 : vector<2xf32> to vector<1x2xf32>
    %c0_11 = arith.constant 0 : index
    %c0_12 = arith.constant 0 : index
    %21 = memref.load %arg5[%c0_11, %c0_12] : memref<1x1xf32, #tpu.memory_space<smem>>
    %22 = vector.broadcast %21 : f32 to vector<1x2xf32>
    %23 = arith.addf %20, %22 : vector<1x2xf32>
    %c0_13 = arith.constant 0 : index
    %c0_14 = arith.constant 0 : index
    %24 = vector.load %arg6[%c0_13, %c0_14] : memref<1x2xf32, #tpu.memory_space<vmem>>, vector<1x2xf32>
    tpu.vector_store %arg6[%c0_13, %c0_14], %23 {strides = array<i32>} : memref<1x2xf32, #tpu.memory_space<vmem>>, vector<1x2xf32>,
    return
  }
  func.func @transform_0(%arg0: i32) -> (i32, i32) {
    %c0_i32 = arith.constant 0 : i32
    %c0_i32_0 = arith.constant 0 : i32
    return %arg0, %c0_i32 : i32, i32
  }
  func.func @transform_1(%arg0: i32) -> (i32, i32) {
    %c0_i32 = arith.constant 0 : i32
    %c0_i32_0 = arith.constant 0 : i32
    %c0_i32_1 = arith.constant 0 : i32
    return %c0_i32, %c0_i32_0 : i32, i32
  }
  func.func @transform_2(%arg0: i32) -> (i32, i32) {
    %c0_i32 = arith.constant 0 : i32
    %c0_i32_0 = arith.constant 0 : i32
    %c0_i32_1 = arith.constant 0 : i32
    return %c0_i32, %c0_i32_0 : i32, i32
  }
  func.func @transform_3(%arg0: i32) -> (i32, i32) {
    %c0_i32 = arith.constant 0 : i32
    %c0_i32_0 = arith.constant 0 : i32
    %c0_i32_1 = arith.constant 0 : i32
    return %c0_i32, %c0_i32_0 : i32, i32
  }
  func.func @transform_4(%arg0: i32) -> (i32, i32) {
    %c0_i32 = arith.constant 0 : i32
    %c0_i32_0 = arith.constant 0 : i32
    %c0_i32_1 = arith.constant 0 : i32
    return %c0_i32, %c0_i32_0 : i32, i32
  }
  func.func @transform_5(%arg0: i32) -> (i32, i32) {
    %c0_i32 = arith.constant 0 : i32
    %c0_i32_0 = arith.constant 0 : i32
    return %c0_i32, %arg0 : i32, i32
  }
}

</mosaic_0001>

<llo_original>
// kernel: tpu_custom_call.1
$region0: #{tpu_custom_call.1}
  #allocation0 [shape = 'u32[]', space=smem, size = 0x4, offset = 0x4, fixed_abs, tag = 'smem constant byte address 0x4 - core index']
  #allocation1 [shape = 'u32[144,128]{1,0:T(1,128)}', space=vmem, size = 0x12000, scoped, tag = 'internal scratch']
  #allocation2 [shape = 'f32[1,1]{1,0:T(1,128)S(6)}', space=smem, size = 0x200, scoped, tag = 'scoped memory for tpu_custom_call.1']
  %s0 = inlined_call_operand.vmem [shape: f32[2,16], index: 0, kind: input, shape index: {}]
  %s1 = inlined_call_operand.vmem [shape: f32[32,16], index: 1, kind: input, shape index: {}]
  %s2 = inlined_call_operand.vmem [shape: f32[32,32], index: 2, kind: input, shape index: {}]
  %s3 = inlined_call_operand.vmem [shape: f32[32,3], index: 3, kind: input, shape index: {}]
  %s4 = inlined_call_operand.<no memory space> [shape: f32[1,1], index: 4, kind: input, shape index: {}]
  %s5 = inlined_call_operand.hbm [shape: f32[1,2], index: 5, kind: output, shape index: {}]
  %s6 = sld [smem:[#allocation0]]
  $region30: #{tpu_custom_call.1} parent=0
    _
  %s8 = ssub.s32 1, %s6
  %s9 = scalar_select 0, %s8, %s6
  %10 = sst [smem:[#allocation2]] %s4
  $region1: #{tpu_custom_call.1} parent=0
    #allocation3 [shape = 'u8[512]{0}', space=vmem, size = 0x400, scoped, tag = 'output window, operand 0, single buffered']
    #allocation4 [shape = 's32[1]{0}', space=sflag, size = 0x4, scoped, tag = 'scoped memory for tpu_custom_call.1']
    %11 = vsyncpa [#allocation4], 0
    // Predicated region
    $region2: #{tpu_custom_call.1} parent=1 // pred_check
      _
    $region3: #{tpu_custom_call.1} parent=1 // pred_check_branch
      %13 = sbr.rel (0) target = $region5
    $region4: #{tpu_custom_call.1} parent=1 // pred_region
      _
    $region5: #{tpu_custom_call.1} parent=1 // pred_fallthru
      _
    // Predicated region
    $region6: #{tpu_custom_call.1} parent=1 // pred_check
      _
    $region7: #{tpu_custom_call.1} parent=1 // pred_check_branch
      %15 = sbr.rel (0) target = $region9
    $region8: #{tpu_custom_call.1} parent=1 // pred_region
      _
    $region9: #{tpu_custom_call.1} parent=1 // pred_fallthru
      _
    // Predicated region
    $region10: #{tpu_custom_call.1} parent=1 // pred_check
      _
    $region11: #{tpu_custom_call.1} parent=1 // pred_check_branch
      %17 = sbr.rel (0) target = $region13
    $region12: #{tpu_custom_call.1} parent=1 // pred_region
      _
    $region13: #{tpu_custom_call.1} parent=1 // pred_fallthru
      _
    // Predicated region
    $region14: #{tpu_custom_call.1} parent=1 // pred_check
      _
    $region15: #{tpu_custom_call.1} parent=1 // pred_check_branch
      %19 = sbr.rel (0) target = $region17
    $region16: #{tpu_custom_call.1} parent=1 // pred_region
      _
    $region17: #{tpu_custom_call.1} parent=1 // pred_fallthru
      _
    // Predicated region
    $region18: #{tpu_custom_call.1} parent=1 // pred_check
      _
    $region19: #{tpu_custom_call.1} parent=1 // pred_check_branch
      %21 = sbr.rel (0) target = $region21
    $region20: #{tpu_custom_call.1} parent=1 // pred_region
      _
    $region21: #{tpu_custom_call.1} parent=1 // pred_fallthru
      _
    %v22 = vld [vmem:[%s0] sm:$0x3]
    %v23 = vld [vmem:[%s3] sm:$0xff]
    %v24 = vld [vmem:[%s3 + $0x8] sm:$0xff]
    %v25 = vld [vmem:[%s3 + $0x10] sm:$0xff]
    %v26 = vld [vmem:[%s3 + $0x18] sm:$0xff]
    %v27 = vld [vmem:[%s1] sm:$0xff]
    %v28 = vld [vmem:[%s1 + $0x8] sm:$0xff]
    %v29 = vld [vmem:[%s1 + $0x10] sm:$0xff]
    %v30 = vld [vmem:[%s1 + $0x18] sm:$0xff]
    %32 = vset.pattern.permute.xlu0 0
    %33 = vperm.xlu0 %32, %v23
    %v34 = vpop.permute.xlu0 %33
    %37 = vset.pattern.permute.xlu0 0
    %38 = vperm.xlu0 %37, %v24
    %v39 = vpop.permute.xlu0 %38
    %42 = vset.pattern.permute.xlu0 0
    %43 = vperm.xlu0 %42, %v25
    %v44 = vpop.permute.xlu0 %43
    %47 = vset.pattern.permute.xlu0 0
    %48 = vperm.xlu0 %47, %v26
    %v49 = vpop.permute.xlu0 %48
    %vm51 = vcmask 130048
    %v53 = vsel %vm51, %v27, 0
    %v56 = vsel %vm51, %v28, 0
    %v59 = vsel %vm51, %v29, 0
    %v62 = vsel %vm51, %v30, 0
    %v65 = vsel %vm51, %v22, 0
    %67 = vmatprep.subr.mxu0 0.0
    %68 = vmatpush1.xpose.msra.mxu0 %v65
    %69 = vmatprep.subr.mxu0 0.0
    %70 = vmatpush1.xpose.msra.mxu0 0.0
    %71 = vmatprep.subr.mxu0 0.0
    %72 = vmatpush1.xpose.msra.mxu0 0.0
    %73 = vmatprep.subr.mxu0 0.0
    %74 = vmatpush1.xpose.msra.mxu0 0.0
    %75 = vmatprep.subr.mxu0 0.0
    %76 = vmatpush1.xpose.msra.mxu0 0.0
    %77 = vmatprep.subr.mxu0 0.0
    %78 = vmatpush1.xpose.msra.mxu0 0.0
    %79 = vmatprep.subr.mxu0 0.0
    %80 = vmatpush1.xpose.msra.mxu0 0.0
    %81 = vmatprep.subr.mxu0 0.0
    %82 = vmatpush1.xpose.msra.mxu0 0.0
    %83 = vmatprep.subr.mxu0 0.0
    %84 = vmatpush1.xpose.msra.mxu0 0.0
    %85 = vmatprep.subr.mxu0 0.0
    %86 = vmatpush1.xpose.msra.mxu0 0.0
    %87 = vmatprep.subr.mxu0 0.0
    %88 = vmatpush1.xpose.msra.mxu0 0.0
    %89 = vmatprep.subr.mxu0 0.0
    %90 = vmatpush1.xpose.msra.mxu0 0.0
    %91 = vmatprep.subr.mxu0 0.0
    %92 = vmatpush1.xpose.msra.mxu0 0.0
    %93 = vmatprep.subr.mxu0 0.0
    %94 = vmatpush1.xpose.msra.mxu0 0.0
    %95 = vmatprep.subr.mxu0 0.0
    %96 = vmatpush1.xpose.msra.mxu0 0.0
    %97 = vmatprep.subr.mxu0 0.0
    %98 = vmatpush1.xpose.msra.mxu0 0.0
    %99 = vmatprep.subr.mxu0 0.0
    %100 = vmatpush1.xpose.msra.mxu0 0.0
    %101 = vmatprep.subr.mxu0 0.0
    %102 = vmatpush1.xpose.msra.mxu0 0.0
    %103 = vmatprep.subr.mxu0 0.0
    %104 = vmatpush1.xpose.msra.mxu0 0.0
    %105 = vmatprep.subr.mxu0 0.0
    %106 = vmatpush1.xpose.msra.mxu0 0.0
    %107 = vmatprep.subr.mxu0 0.0
    %108 = vmatpush1.xpose.msra.mxu0 0.0
    %109 = vmatprep.subr.mxu0 0.0
    %110 = vmatpush1.xpose.msra.mxu0 0.0
    %111 = vmatprep.subr.mxu0 0.0
    %112 = vmatpush1.xpose.msra.mxu0 0.0
    %113 = vmatprep.subr.mxu0 0.0
    %114 = vmatpush1.xpose.msra.mxu0 0.0
    %115 = vmatprep.subr.mxu0 0.0
    %116 = vmatpush1.xpose.msra.mxu0 0.0
    %117 = vmatprep.subr.mxu0 0.0
    %118 = vmatpush1.xpose.msra.mxu0 0.0
    %119 = vmatprep.subr.mxu0 0.0
    %120 = vmatpush1.xpose.msra.mxu0 0.0
    %121 = vmatprep.subr.mxu0 0.0
    %122 = vmatpush1.xpose.msra.mxu0 0.0
    %123 = vmatprep.subr.mxu0 0.0
    %124 = vmatpush1.xpose.msra.mxu0 0.0
    %125 = vmatprep.subr.mxu0 0.0
    %126 = vmatpush1.xpose.msra.mxu0 0.0
    %127 = vmatprep.subr.mxu0 0.0
    %128 = vmatpush1.xpose.msra.mxu0 0.0
    %129 = vmatprep.subr.mxu0 0.0
    %130 = vmatpush1.xpose.msra.mxu0 0.0
    %131 = vmatprep.mubr.f32.mxu0 0.0
    %132 = vmatmul.mubr.f32.gmra.mrb[0].mxu0 %v53
    %v133 = vpop.f32.mrb[0].mxu0
    %v134 = vadd.f32 %v34, %v133
    %v135 = vpop.f32.mrb[0].mxu0
    %136 = vmatprep.mubr.f32.mxu0 0.0
    %137 = vmatmul.mubr.f32.gmra.mrb[0].mxu0 %v56
    %v138 = vpop.f32.mrb[0].mxu0
    %v139 = vadd.f32 %v39, %v138
    %v140 = vpop.f32.mrb[0].mxu0
    %141 = vmatprep.mubr.f32.mxu0 0.0
    %142 = vmatmul.mubr.f32.gmra.mrb[0].mxu0 %v59
    %v143 = vpop.f32.mrb[0].mxu0
    %v144 = vadd.f32 %v44, %v143
    %v145 = vpop.f32.mrb[0].mxu0
    %146 = vmatprep.mubr.f32.mxu0 0.0
    %147 = vmatmul.mubr.f32.gmra.mrb[0].mxu0 %v62
    %v148 = vpop.f32.mrb[0].mxu0
    %v149 = vadd.f32 %v49, %v148
    %v150 = vpop.f32.mrb[0].mxu0
    %151 = vdwg.mxu0
    %v152 = vmax.f32 %v134, 0.0
    %v153 = vmax.f32 %v139, 0.0
    %v154 = vmax.f32 %v144, 0.0
    %v155 = vmax.f32 %v149, 0.0
    %v156 = vld [vmem:[%s2] sm:$0xff]
    %v157 = vld [vmem:[%s2 + $0x8] sm:$0xff]
    %v158 = vld [vmem:[%s2 + $0x10] sm:$0xff]
    %v159 = vld [vmem:[%s2 + $0x18] sm:$0xff]
    %160 = vset.pattern.permute.xlu0 1
    %161 = vperm.xlu0 %160, %v23
    %v162 = vpop.permute.xlu0 %161
    %164 = vset.pattern.permute.xlu0 1
    %165 = vperm.xlu0 %164, %v24
    %v166 = vpop.permute.xlu0 %165
    %168 = vset.pattern.permute.xlu0 1
    %169 = vperm.xlu0 %168, %v25
    %v170 = vpop.permute.xlu0 %169
    %172 = vset.pattern.permute.xlu0 1
    %173 = vperm.xlu0 %172, %v26
    %v174 = vpop.permute.xlu0 %173
    %vm176 = vcmask 261120
    %v178 = vsel %vm176, %v156, 0
    %v181 = vsel %vm176, %v157, 0
    %v184 = vsel %vm176, %v158, 0
    %v187 = vsel %vm176, %v159, 0
    %189 = vmatprep.subr.mxu0 0.0
    %190 = vmatpush1.msra.mxu0 %v152
    %191 = vmatprep.subr.mxu0 0.0
    %192 = vmatpush1.msra.mxu0 %v153
    %193 = vmatprep.subr.mxu0 0.0
    %194 = vmatpush1.msra.mxu0 %v154
    %195 = vmatprep.subr.mxu0 0.0
    %196 = vmatpush1.msra.mxu0 %v155
    %197 = vmatprep.subr.mxu0 0.0
    %198 = vmatpush1.msra.mxu0 0.0
    %199 = vmatprep.subr.mxu0 0.0
    %200 = vmatpush1.msra.mxu0 0.0
    %201 = vmatprep.subr.mxu0 0.0
    %202 = vmatpush1.msra.mxu0 0.0
    %203 = vmatprep.subr.mxu0 0.0
    %204 = vmatpush1.msra.mxu0 0.0
    %205 = vmatprep.subr.mxu0 0.0
    %206 = vmatpush1.msra.mxu0 0.0
    %207 = vmatprep.subr.mxu0 0.0
    %208 = vmatpush1.msra.mxu0 0.0
    %209 = vmatprep.subr.mxu0 0.0
    %210 = vmatpush1.msra.mxu0 0.0
    %211 = vmatprep.subr.mxu0 0.0
    %212 = vmatpush1.msra.mxu0 0.0
    %213 = vmatprep.subr.mxu0 0.0
    %214 = vmatpush1.msra.mxu0 0.0
    %215 = vmatprep.subr.mxu0 0.0
    %216 = vmatpush1.msra.mxu0 0.0
    %217 = vmatprep.subr.mxu0 0.0
    %218 = vmatpush1.msra.mxu0 0.0
    %219 = vmatprep.subr.mxu0 0.0
    %220 = vmatpush1.msra.mxu0 0.0
    %221 = vmatprep.subr.mxu0 0.0
    %222 = vmatpush1.msra.mxu0 0.0
    %223 = vmatprep.subr.mxu0 0.0
    %224 = vmatpush1.msra.mxu0 0.0
    %225 = vmatprep.subr.mxu0 0.0
    %226 = vmatpush1.msra.mxu0 0.0
    %227 = vmatprep.subr.mxu0 0.0
    %228 = vmatpush1.msra.mxu0 0.0
    %229 = vmatprep.subr.mxu0 0.0
    %230 = vmatpush1.msra.mxu0 0.0
    %231 = vmatprep.subr.mxu0 0.0
    %232 = vmatpush1.msra.mxu0 0.0
    %233 = vmatprep.subr.mxu0 0.0
    %234 = vmatpush1.msra.mxu0 0.0
    %235 = vmatprep.subr.mxu0 0.0
    %236 = vmatpush1.msra.mxu0 0.0
    %237 = vmatprep.subr.mxu0 0.0
    %238 = vmatpush1.msra.mxu0 0.0
    %239 = vmatprep.subr.mxu0 0.0
    %240 = vmatpush1.msra.mxu0 0.0
    %241 = vmatprep.subr.mxu0 0.0
    %242 = vmatpush1.msra.mxu0 0.0
    %243 = vmatprep.subr.mxu0 0.0
    %244 = vmatpush1.msra.mxu0 0.0
    %245 = vmatprep.subr.mxu0 0.0
    %246 = vmatpush1.msra.mxu0 0.0
    %247 = vmatprep.subr.mxu0 0.0
    %248 = vmatpush1.msra.mxu0 0.0
    %249 = vmatprep.subr.mxu0 0.0
    %250 = vmatpush1.msra.mxu0 0.0
    %251 = vmatprep.subr.mxu0 0.0
    %252 = vmatpush1.msra.mxu0 0.0
    %253 = vmatprep.mubr.f32.mxu0 0.0
    %254 = vmatmul.mubr.f32.gmra.mrb[0].mxu0 %v178
    %v255 = vpop.f32.mrb[0].mxu0
    %v256 = vadd.f32 %v162, %v255
    %v257 = vpop.f32.mrb[0].mxu0
    %258 = vmatprep.mubr.f32.mxu0 0.0
    %259 = vmatmul.mubr.f32.gmra.mrb[0].mxu0 %v181
    %v260 = vpop.f32.mrb[0].mxu0
    %v261 = vadd.f32 %v166, %v260
    %v262 = vpop.f32.mrb[0].mxu0
    %263 = vmatprep.mubr.f32.mxu0 0.0
    %264 = vmatmul.mubr.f32.gmra.mrb[0].mxu0 %v184
    %v265 = vpop.f32.mrb[0].mxu0
    %v266 = vadd.f32 %v170, %v265
    %v267 = vpop.f32.mrb[0].mxu0
    %268 = vmatprep.mubr.f32.mxu0 0.0
    %269 = vmatmul.mubr.f32.gmra.mrb[0].mxu0 %v187
    %v270 = vpop.f32.mrb[0].mxu0
    %v271 = vadd.f32 %v174, %v270
    %v272 = vpop.f32.mrb[0].mxu0
    %273 = vdwg.mxu0
    %v274 = vmax.f32 %v256, 0.0
    %v275 = vmax.f32 %v261, 0.0
    %v276 = vmax.f32 %v266, 0.0
    %v277 = vmax.f32 %v271, 0.0
    %278 = vset.pattern.permute.xlu0 2
    %279 = vperm.xlu0 %278, %v23
    %v280 = vpop.permute.xlu0 %279
    %282 = vset.pattern.permute.xlu0 2
    %283 = vperm.xlu0 %282, %v24
    %v284 = vpop.permute.xlu0 %283
    %286 = vset.pattern.permute.xlu0 2
    %287 = vperm.xlu0 %286, %v25
    %v288 = vpop.permute.xlu0 %287
    %290 = vset.pattern.permute.xlu0 2
    %291 = vperm.xlu0 %290, %v26
    %v292 = vpop.permute.xlu0 %291
    %v294 = vmul.f32 %v274, %v280
    %v295 = vmul.f32 %v275, %v284
    %v296 = vmul.f32 %v276, %v288
    %v297 = vmul.f32 %v277, %v292
    %vm298 = vcmask 15360
    %v299 = vsel %vm298, %v294, 0.0
    %v300 = vsel %vm298, %v295, 0.0
    %v301 = vadd.f32 %v299, %v300
    %v302 = vsel %vm298, %v296, 0.0
    %v303 = vadd.f32 %v301, %v302
    %v304 = vsel %vm298, %v297, 0.0
    %v305 = vadd.f32 %v303, %v304
    %v306 = vrot.slane %v305, 4
    %v307 = vadd.f32 %v305, %v306
    %v308 = vrot.slane %v307, 2
    %v309 = vadd.f32 %v307, %v308
    %v310 = vrot.slane %v309, 1
    %v311 = vadd.f32 %v309, %v310
    %s312 = sld [smem:[#allocation2]]
    %v313 = vstv %s312
    %v314 = vadd.f32 %v311, %v313
    %vm315 = vcmask 8192
    %316 = vst.msk [vmem:[#allocation3] sm:$0x1] %vm315, %v314
    // Predicated region
    $region22: #{tpu_custom_call.1} parent=1 // pred_check
      _
    $region23: #{tpu_custom_call.1} parent=1 // pred_check_branch
      %318 = sbr.rel (0) target = $region25
    $region24: #{tpu_custom_call.1} parent=1 // pred_region
      %s320 = ssub.s32 16, 16
      %321 = vsyncadd [#allocation4], %s320
      %s323 = sshll.u32 [#allocation3], 4
      %s324 = int_to_ptr.vmem [resolvable:$true] %s323
      %326 = dma.vmem_to_hbm [thread:$0]  %s324, 16, %s5, [#allocation4]
    $region25: #{tpu_custom_call.1} parent=1 // pred_fallthru
      _
    // Predicated region
    $region26: #{tpu_custom_call.1} parent=1 // pred_check
      _
    $region27: #{tpu_custom_call.1} parent=1 // pred_check_branch
      %328 = sbr.rel (0) target = $region29
    $region28: #{tpu_custom_call.1} parent=1 // pred_region
      %329 = dma.done [#allocation4], 16
    $region29: #{tpu_custom_call.1} parent=1 // pred_fallthru
      _
    %330 = vsyncpa [#allocation4], 1

</llo_original>
